<compile_context>
chip_gen: v5e
topology: v5e:2x2
jax: 0.10.0
libtpu: 0.0.40
codegen_flags: <defaults>
</compile_context>

<pallas_src>
import functools

import jax
import jax.numpy as jnp
from jax.experimental import pallas as pl
from jax.experimental.pallas import tpu as pltpu


def _round_up(n, m):
    return ((n + m - 1) // m) * m


@functools.lru_cache(maxsize=1)
def _vmem_limit_bytes():
    """~80% of physical VMEM (leaves headroom for compiler-internal scratch)."""
    cap = 64 << 20
    try:
        info = pltpu.get_tpu_info()
        cap = int(getattr(info, "vmem_capacity_bytes", cap)) or cap
    except Exception:
        pass
    return min(int(cap * 0.8), 112 << 20)


def _choose_row_tile(m, block_rows):
    """Pick (tm, m_pad). Prefer tiles that divide m exactly (no pad / slice)."""
    block_rows = max(8, (block_rows // 8) * 8)
    if m <= block_rows:
        if m >= 256 and m % 16 == 0:
            return m // 2, m          # >=2 row tiles so v7x's two TCs share work
        if m % 8 == 0:
            return m, m
        m_pad = _round_up(m, 8)
        return m_pad, m_pad
    # Large m: look for a big divisor (avoids wrapper-side pad + slice copies).
    for tm in range(block_rows, max(8, block_rows // 4) - 1, -8):
        if m % tm == 0:
            return tm, m
    return block_rows, pl.cdiv(m, block_rows) * block_rows


def _choose_hidden_tile(dim, hidden, tm, itemsize, budget, forced=None):
    """Largest hidden tile that keeps the kernel inside the VMEM budget."""
    if (forced is not None and hidden % forced == 0
            and (forced % 128 == 0 or forced == hidden)):
        return forced
    # x tile + out tile (double-buffered) + f32 accumulator + b2.
    fixed = 4 * tm * dim * itemsize + tm * dim * 4 + dim * 4

    def cost(th, nbuf):
        w = nbuf * 2 * dim * th * itemsize   # W1 tile + W2 tile
        b = nbuf * th * 4                    # b1 tile (f32)
        inter = tm * th * 4                  # f32 hidden intermediate
        return fixed + w + b + inter

    if cost(hidden, 1) <= budget:
        return hidden                        # weights fully resident
    th = (hidden // 128) * 128
    while th >= 128:
        if hidden % th == 0 and cost(th, 2) <= budget:
            return th
        th -= 128
    # Best effort: smallest lane-dense divisor.
    for cand in range(128, hidden + 1, 128):
        if hidden % cand == 0:
            return cand
    return hidden


def _ffn_kernel(x_ref, w1_ref, b1_ref, w2_ref, b2_ref, o_ref, acc_ref):
    # x_ref:  (tm, dim)      w1_ref: (dim, th)    b1_ref: (1, th)
    # w2_ref: (th, dim)      b2_ref: (1, dim)
    # o_ref:  (tm, dim)      acc_ref: (tm, dim) f32 scratch
    j = pl.program_id(1)

    @pl.when(j == 0)
    def _init():
        acc_ref[...] = jnp.zeros_like(acc_ref)

    h = jnp.dot(x_ref[...], w1_ref[...], preferred_element_type=jnp.float32)
    h = h + b1_ref[...].astype(jnp.float32)
    h = h * jax.nn.sigmoid(h)                       # Swish / SiLU (sigmoid -> EUP)
    # Dropout(p=0.0) is identity in the forward pass.
    acc_ref[...] += jnp.dot(h.astype(w2_ref.dtype), w2_ref[...],
                            preferred_element_type=jnp.float32)

    @pl.when(j == pl.num_programs(1) - 1)
    def _store():
        y = acc_ref[...] + b2_ref[...].astype(jnp.float32)
        o_ref[...] = y.astype(o_ref.dtype)


@functools.partial(
    jax.jit,
    static_argnames=("tm", "th", "single_buffer_resident", "out_dtype"))
def _ffn_call(x2, w1_t, b1_2d, w2_t, b2_2d, *, tm, th, single_buffer_resident,
              out_dtype):
    m_pad, dim = x2.shape
    hidden = w1_t.shape[1]
    h_tiles = hidden // th
    n_row_tiles = m_pad // tm
    resident = h_tiles == 1

    def spec(shape, idx, constant):
        if constant and single_buffer_resident:
            # Constant index_map -> no need to double-buffer (halves VMEM).
            return pl.BlockSpec(shape, idx, pipeline_mode=pl.Buffered(1))
        return pl.BlockSpec(shape, idx)

    in_specs = [
        pl.BlockSpec((tm, dim), lambda i, j: (i, 0)),              # x tile
        spec((dim, th), lambda i, j: (0, j), constant=resident),   # W1^T
        spec((1, th), lambda i, j: (0, j), constant=resident),     # b1
        spec((th, dim), lambda i, j: (j, 0), constant=resident),   # W2^T
        spec((1, dim), lambda i, j: (0, 0), constant=True),        # b2
    ]

    weight_reads = 1 if resident else n_row_tiles
    cost = pl.CostEstimate(
        flops=int(4 * m_pad * dim * hidden),
        transcendentals=int(m_pad * hidden),
        bytes_accessed=int(
            2 * m_pad * dim * x2.dtype.itemsize
            + weight_reads * (w1_t.size + w2_t.size) * w1_t.dtype.itemsize
            + (b1_2d.size + b2_2d.size) * 4),
    )

    return pl.pallas_call(
        _ffn_kernel,
        out_shape=jax.ShapeDtypeStruct((m_pad, dim), out_dtype),
        grid_spec=pltpu.PrefetchScalarGridSpec(
            num_scalar_prefetch=0,
            grid=(n_row_tiles, h_tiles),
            in_specs=in_specs,
            out_specs=pl.BlockSpec((tm, dim), lambda i, j: (i, 0)),
            scratch_shapes=[pltpu.VMEM((tm, dim), jnp.float32)],
        ),
        compiler_params=pltpu.CompilerParams(
            dimension_semantics=("parallel", "arbitrary"),
            vmem_limit_bytes=_vmem_limit_bytes(),
        ),
        cost_estimate=cost,
    )(x2, w1_t, b1_2d, w2_t, b2_2d)


_SINGLE_BUFFER_OK = True  # flips off automatically if pl.Buffered(1) is rejected


def feed_forward(x, w1_t, b1, w2_t, b2, *, block_rows=512, compute_dtype=None,
                 hidden_block=None):
    """Fused FFN: swish(x @ w1_t + b1) @ w2_t + b2.

    x:    (..., dim)
    w1_t: (dim, hidden)   b1: (hidden,)
    w2_t: (hidden, dim)   b2: (dim,)
    compute_dtype: optional MXU dtype for x/W1/W2 (e.g. jnp.bfloat16);
                   accumulation is always f32; output keeps x.dtype.
    """
    global _SINGLE_BUFFER_OK
    orig_shape = x.shape
    out_dtype = x.dtype
    dim = orig_shape[-1]
    hidden = w1_t.shape[1]

    cdt = jnp.dtype(compute_dtype) if compute_dtype is not None else jnp.dtype(x.dtype)

    x2 = x.reshape(-1, dim)
    m = x2.shape[0]
    tm, m_pad = _choose_row_tile(m, block_rows)
    th = _choose_hidden_tile(dim, hidden, tm, cdt.itemsize,
                             int(_vmem_limit_bytes() * 0.8), forced=hidden_block)

    if m_pad != m:  # only when m isn't a multiple of 8 (rare; last resort)
        x2 = jnp.pad(x2, ((0, m_pad - m), (0, 0)))

    x2 = x2.astype(cdt)
    w1c = w1_t.astype(cdt)
    w2c = w2_t.astype(cdt)
    b1_2d = b1.reshape(1, hidden).astype(jnp.float32)
    b2_2d = b2.reshape(1, dim).astype(jnp.float32)

    kwargs = dict(tm=tm, th=th, out_dtype=out_dtype)
    if _SINGLE_BUFFER_OK:
        try:
            out2d = _ffn_call(x2, w1c, b1_2d, w2c, b2_2d,
                              single_buffer_resident=True, **kwargs)
        except Exception:
            _SINGLE_BUFFER_OK = False
            out2d = _ffn_call(x2, w1c, b1_2d, w2c, b2_2d,
                              single_buffer_resident=False, **kwargs)
    else:
        out2d = _ffn_call(x2, w1c, b1_2d, w2c, b2_2d,
                          single_buffer_resident=False, **kwargs)

    if m_pad != m:
        out2d = out2d[:m]
    return out2d.reshape(orig_shape)


def _reference(x, w1_t, b1, w2_t, b2):
    h = jnp.dot(x.astype(jnp.float32), w1_t.astype(jnp.float32)) + b1
    h = h * jax.nn.sigmoid(h)
    y = jnp.dot(h, w2_t.astype(jnp.float32)) + b2
    return y.astype(x.dtype)


if __name__ == "__main__":
    key = jax.random.PRNGKey(0)
    kx, k1, kb1, k2, kb2 = jax.random.split(key, 5)

    batch, seq, dim, mult = 2, 8, 32, 4
    hidden = dim * mult  # 128

    x = jax.random.normal(kx, (batch, seq, dim), dtype=jnp.float32)
    # nn.Linear weights are (out, in); pass them pre-transposed to the kernel.
    w1 = jax.random.normal(k1, (hidden, dim), dtype=jnp.float32) * 0.05
    b1 = jax.random.normal(kb1, (hidden,), dtype=jnp.float32) * 0.05
    w2 = jax.random.normal(k2, (dim, hidden), dtype=jnp.float32) * 0.05
    b2 = jax.random.normal(kb2, (dim,), dtype=jnp.float32) * 0.05
    w1_t, w2_t = w1.T, w2.T

    ref = _reference(x, w1_t, b1, w2_t, b2)

    # f32 path (matches the PyTorch module numerics).
    out = jax.block_until_ready(feed_forward(x, w1_t, b1, w2_t, b2))
    assert out.shape == x.shape and out.dtype == x.dtype
    assert jnp.allclose(out, ref, atol=1e-4, rtol=1e-4), (
        float(jnp.max(jnp.abs(out - ref))))

    # bf16 MXU path (perf mode on v6e/v7x) — f32 accumulation, looser tolerance.
    out_bf16 = jax.block_until_ready(
        feed_forward(x, w1_t, b1, w2_t, b2, compute_dtype=jnp.bfloat16))
    assert out_bf16.shape == x.shape and out_bf16.dtype == x.dtype
    assert jnp.allclose(out_bf16, ref, atol=5e-2, rtol=5e-2), (
        float(jnp.max(jnp.abs(out_bf16 - ref))))

    # Hidden-tiled accumulation path (the structure used when dim*hidden is
    # too large for fully-resident weights) — exercised with a forced tile.
    dim2, mult2 = 32, 8
    hidden2 = dim2 * mult2  # 256 -> two 128-wide hidden tiles
    x3 = jax.random.normal(kx, (batch, seq, dim2), dtype=jnp.float32)
    w1b = jax.random.normal(k1, (hidden2, dim2), dtype=jnp.float32) * 0.05
    b1b = jax.random.normal(kb1, (hidden2,), dtype=jnp.float32) * 0.05
    w2b = jax.random.normal(k2, (dim2, hidden2), dtype=jnp.float32) * 0.05
    b2b = jax.random.normal(kb2, (dim2,), dtype=jnp.float32) * 0.05
    out_tiled = jax.block_until_ready(
        feed_forward(x3, w1b.T, b1b, w2b.T, b2b, hidden_block=128))
    ref_tiled = _reference(x3, w1b.T, b1b, w2b.T, b2b)
    assert jnp.allclose(out_tiled, ref_tiled, atol=1e-4, rtol=1e-4), (
        float(jnp.max(jnp.abs(out_tiled - ref_tiled))))

    # TODO(synk): Dropout with p>0.0 (training mode) would need
    # pltpu.prng_seed/prng_random_bits; module default p=0.0 makes it identity.
    print("KERNEL_OK")
</pallas_src>

<mosaic_0001>
module attributes {stable_mosaic.version = 11 : i64} {
  func.func @_ffn_kernel(%arg0: i32, %arg1: i32, %arg2: memref<16x32xf32, #tpu.memory_space<vmem>>, %arg3: memref<32x128xf32, #tpu.memory_space<vmem>>, %arg4: memref<1x128xf32, #tpu.memory_space<vmem>>, %arg5: memref<128x32xf32, #tpu.memory_space<vmem>>, %arg6: memref<1x32xf32, #tpu.memory_space<vmem>>, %arg7: memref<16x32xf32, #tpu.memory_space<vmem>>, %arg8: memref<16x32xf32, #tpu.memory_space<vmem>>) attributes {dimension_semantics = [#tpu.dimension_semantics<parallel>, #tpu.dimension_semantics<arbitrary>], iteration_bounds = array<i64: 1, 1>, scalar_prefetch = 0 : i64, scratch_operands = 1 : i64, tpu.core_type = #tpu.core_type<tc>, window_params = [{transform_indices = @transform_0, window_bounds = array<i64: 16, 32>}, {pipeline_mode = #tpu.pipeline_mode<synchronous>, transform_indices = @transform_1, window_bounds = array<i64: 32, 128>}, {pipeline_mode = #tpu.pipeline_mode<synchronous>, transform_indices = @transform_2, window_bounds = array<i64: 1, 128>}, {pipeline_mode = #tpu.pipeline_mode<synchronous>, transform_indices = @transform_3, window_bounds = array<i64: 128, 32>}, {pipeline_mode = #tpu.pipeline_mode<synchronous>, transform_indices = @transform_4, window_bounds = array<i64: 1, 32>}, {transform_indices = @transform_5, window_bounds = array<i64: 16, 32>}]} {
    %c0_i32 = arith.constant 0 : i32
    %0 = arith.cmpi eq, %arg1, %c0_i32 : i32
    %1 = arith.extui %0 : i1 to i32
    %c0_i32_0 = arith.constant 0 : i32
    %2 = arith.cmpi ne, %1, %c0_i32_0 : i32
    scf.if %2 {
      %cst_16 = arith.constant 0.000000e+00 : f32
      %23 = vector.broadcast %cst_16 : f32 to vector<16x32xf32>
      %c0_17 = arith.constant 0 : index
      %c0_18 = arith.constant 0 : index
      %24 = vector.load %arg8[%c0_17, %c0_18] : memref<16x32xf32, #tpu.memory_space<vmem>>, vector<16x32xf32>
      tpu.vector_store %arg8[%c0_17, %c0_18], %23 {strides = array<i32>} : memref<16x32xf32, #tpu.memory_space<vmem>>, vector<16x32xf32>,
    } else {
    }
    %c0 = arith.constant 0 : index
    %c0_1 = arith.constant 0 : index
    %3 = vector.load %arg2[%c0, %c0_1] : memref<16x32xf32, #tpu.memory_space<vmem>>, vector<16x32xf32>
    %c0_2 = arith.constant 0 : index
    %c0_3 = arith.constant 0 : index
    %4 = vector.load %arg3[%c0_2, %c0_3] : memref<32x128xf32, #tpu.memory_space<vmem>>, vector<32x128xf32>
    %cst = arith.constant dense<0.000000e+00> : vector<16x128xf32>
    %5 = tpu.matmul %3, %4, %cst {dimension_numbers = #tpu.dot_dimension_numbers<[1], [0], [0], [1], [0, 0, 1, 1], [], []>} : vector<16x32xf32>, vector<32x128xf32>, vector<16x128xf32> -> vector<16x128xf32>
    %c0_4 = arith.constant 0 : index
    %c0_5 = arith.constant 0 : index
    %6 = vector.load %arg4[%c0_4, %c0_5] : memref<1x128xf32, #tpu.memory_space<vmem>>, vector<1x128xf32>
    %7 = vector.broadcast %6 : vector<1x128xf32> to vector<16x128xf32>
    %8 = arith.addf %5, %7 : vector<16x128xf32>
    %9 = arith.negf %8 : vector<16x128xf32>
    %10 = math.exp %9 : vector<16x128xf32>
    %cst_6 = arith.constant 1.000000e+00 : f32
    %11 = vector.broadcast %cst_6 : f32 to vector<16x128xf32>
    %12 = arith.addf %11, %10 : vector<16x128xf32>
    %13 = arith.divf %11, %12 : vector<16x128xf32>
    %14 = arith.mulf %8, %13 : vector<16x128xf32>
    %c0_7 = arith.constant 0 : index
    %c0_8 = arith.constant 0 : index
    %15 = vector.load %arg8[%c0_7, %c0_8] : memref<16x32xf32, #tpu.memory_space<vmem>>, vector<16x32xf32>
    %c0_9 = arith.constant 0 : index
    %c0_10 = arith.constant 0 : index
    %16 = vector.load %arg5[%c0_9, %c0_10] : memref<128x32xf32, #tpu.memory_space<vmem>>, vector<128x32xf32>
    %cst_11 = arith.constant dense<0.000000e+00> : vector<16x32xf32>
    %17 = tpu.matmul %14, %16, %cst_11 {dimension_numbers = #tpu.dot_dimension_numbers<[1], [0], [0], [1], [0, 0, 1, 1], [], []>} : vector<16x128xf32>, vector<128x32xf32>, vector<16x32xf32> -> vector<16x32xf32>
    %18 = arith.addf %15, %17 : vector<16x32xf32>
    %c0_12 = arith.constant 0 : index
    %c0_13 = arith.constant 0 : index
    %19 = vector.load %arg8[%c0_12, %c0_13] : memref<16x32xf32, #tpu.memory_space<vmem>>, vector<16x32xf32>
    tpu.vector_store %arg8[%c0_12, %c0_13], %18 {strides = array<i32>} : memref<16x32xf32, #tpu.memory_space<vmem>>, vector<16x32xf32>,
    %c0_i32_14 = arith.constant 0 : i32
    %20 = arith.cmpi eq, %arg1, %c0_i32_14 : i32
    %21 = arith.extui %20 : i1 to i32
    %c0_i32_15 = arith.constant 0 : i32
    %22 = arith.cmpi ne, %21, %c0_i32_15 : i32
    scf.if %22 {
      %c0_16 = arith.constant 0 : index
      %c0_17 = arith.constant 0 : index
      %23 = vector.load %arg8[%c0_16, %c0_17] : memref<16x32xf32, #tpu.memory_space<vmem>>, vector<16x32xf32>
      %c0_18 = arith.constant 0 : index
      %c0_19 = arith.constant 0 : index
      %24 = vector.load %arg6[%c0_18, %c0_19] : memref<1x32xf32, #tpu.memory_space<vmem>>, vector<1x32xf32>
      %25 = vector.broadcast %24 : vector<1x32xf32> to vector<16x32xf32>
      %26 = arith.addf %23, %25 : vector<16x32xf32>
      %c0_20 = arith.constant 0 : index
      %c0_21 = arith.constant 0 : index
      %27 = vector.load %arg7[%c0_20, %c0_21] : memref<16x32xf32, #tpu.memory_space<vmem>>, vector<16x32xf32>
      tpu.vector_store %arg7[%c0_20, %c0_21], %26 {strides = array<i32>} : memref<16x32xf32, #tpu.memory_space<vmem>>, vector<16x32xf32>,
    } else {
    }
    return
  }
  func.func @transform_0(%arg0: i32, %arg1: i32) -> (i32, i32) {
    %c0_i32 = arith.constant 0 : i32
    %c0_i32_0 = arith.constant 0 : i32
    return %arg0, %c0_i32 : i32, i32
  }
  func.func @transform_1(%arg0: i32, %arg1: i32) -> (i32, i32) {
    %c0_i32 = arith.constant 0 : i32
    %c0_i32_0 = arith.constant 0 : i32
    return %c0_i32, %arg1 : i32, i32
  }
  func.func @transform_2(%arg0: i32, %arg1: i32) -> (i32, i32) {
    %c0_i32 = arith.constant 0 : i32
    %c0_i32_0 = arith.constant 0 : i32
    return %c0_i32, %arg1 : i32, i32
  }
  func.func @transform_3(%arg0: i32, %arg1: i32) -> (i32, i32) {
    %c0_i32 = arith.constant 0 : i32
    %c0_i32_0 = arith.constant 0 : i32
    return %arg1, %c0_i32 : i32, i32
  }
  func.func @transform_4(%arg0: i32, %arg1: i32) -> (i32, i32) {
    %c0_i32 = arith.constant 0 : i32
    %c0_i32_0 = arith.constant 0 : i32
    %c0_i32_1 = arith.constant 0 : i32
    return %c0_i32, %c0_i32_0 : i32, i32
  }
  func.func @transform_5(%arg0: i32, %arg1: i32) -> (i32, i32) {
    %c0_i32 = arith.constant 0 : i32
    %c0_i32_0 = arith.constant 0 : i32
    return %arg0, %c0_i32 : i32, i32
  }
}

module attributes {stable_mosaic.version = 11 : i64} {
  func.func @_ffn_kernel(%arg0: i32, %arg1: i32, %arg2: memref<16x32xf32, #tpu.memory_space<vmem>>, %arg3: memref<32x128xf32, #tpu.memory_space<vmem>>, %arg4: memref<1x128xf32, #tpu.memory_space<vmem>>, %arg5: memref<128x32xf32, #tpu.memory_space<vmem>>, %arg6: memref<1x32xf32, #tpu.memory_space<vmem>>, %arg7: memref<16x32xf32, #tpu.memory_space<vmem>>, %arg8: memref<16x32xf32, #tpu.memory_space<vmem>>) attributes {dimension_semantics = [#tpu.dimension_semantics<parallel>, #tpu.dimension_semantics<arbitrary>], iteration_bounds = array<i64: 1, 1>, scalar_prefetch = 0 : i64, scratch_operands = 1 : i64, tpu.core_type = #tpu.core_type<tc>, window_params = [{transform_indices = @transform_0, window_bounds = array<i64: 16, 32>}, {transform_indices = @transform_1, window_bounds = array<i64: 32, 128>}, {transform_indices = @transform_2, window_bounds = array<i64: 1, 128>}, {transform_indices = @transform_3, window_bounds = array<i64: 128, 32>}, {pipeline_mode = #tpu.pipeline_mode<synchronous>, transform_indices = @transform_4, window_bounds = array<i64: 1, 32>}, {transform_indices = @transform_5, window_bounds = array<i64: 16, 32>}]} {
    %c0_i32 = arith.constant 0 : i32
    %0 = arith.cmpi eq, %arg1, %c0_i32 : i32
    %1 = arith.extui %0 : i1 to i32
    %c0_i32_0 = arith.constant 0 : i32
    %2 = arith.cmpi ne, %1, %c0_i32_0 : i32
    scf.if %2 {
      %cst_16 = arith.constant 0.000000e+00 : f32
      %23 = vector.broadcast %cst_16 : f32 to vector<16x32xf32>
      %c0_17 = arith.constant 0 : index
      %c0_18 = arith.constant 0 : index
      %24 = vector.load %arg8[%c0_17, %c0_18] : memref<16x32xf32, #tpu.memory_space<vmem>>, vector<16x32xf32>
      tpu.vector_store %arg8[%c0_17, %c0_18], %23 {strides = array<i32>} : memref<16x32xf32, #tpu.memory_space<vmem>>, vector<16x32xf32>,
    } else {
    }
    %c0 = arith.constant 0 : index
    %c0_1 = arith.constant 0 : index
    %3 = vector.load %arg2[%c0, %c0_1] : memref<16x32xf32, #tpu.memory_space<vmem>>, vector<16x32xf32>
    %c0_2 = arith.constant 0 : index
    %c0_3 = arith.constant 0 : index
    %4 = vector.load %arg3[%c0_2, %c0_3] : memref<32x128xf32, #tpu.memory_space<vmem>>, vector<32x128xf32>
    %cst = arith.constant dense<0.000000e+00> : vector<16x128xf32>
    %5 = tpu.matmul %3, %4, %cst {dimension_numbers = #tpu.dot_dimension_numbers<[1], [0], [0], [1], [0, 0, 1, 1], [], []>} : vector<16x32xf32>, vector<32x128xf32>, vector<16x128xf32> -> vector<16x128xf32>
    %c0_4 = arith.constant 0 : index
    %c0_5 = arith.constant 0 : index
    %6 = vector.load %arg4[%c0_4, %c0_5] : memref<1x128xf32, #tpu.memory_space<vmem>>, vector<1x128xf32>
    %7 = vector.broadcast %6 : vector<1x128xf32> to vector<16x128xf32>
    %8 = arith.addf %5, %7 : vector<16x128xf32>
    %9 = arith.negf %8 : vector<16x128xf32>
    %10 = math.exp %9 : vector<16x128xf32>
    %cst_6 = arith.constant 1.000000e+00 : f32
    %11 = vector.broadcast %cst_6 : f32 to vector<16x128xf32>
    %12 = arith.addf %11, %10 : vector<16x128xf32>
    %13 = arith.divf %11, %12 : vector<16x128xf32>
    %14 = arith.mulf %8, %13 : vector<16x128xf32>
    %c0_7 = arith.constant 0 : index
    %c0_8 = arith.constant 0 : index
    %15 = vector.load %arg8[%c0_7, %c0_8] : memref<16x32xf32, #tpu.memory_space<vmem>>, vector<16x32xf32>
    %c0_9 = arith.constant 0 : index
    %c0_10 = arith.constant 0 : index
    %16 = vector.load %arg5[%c0_9, %c0_10] : memref<128x32xf32, #tpu.memory_space<vmem>>, vector<128x32xf32>
    %cst_11 = arith.constant dense<0.000000e+00> : vector<16x32xf32>
    %17 = tpu.matmul %14, %16, %cst_11 {dimension_numbers = #tpu.dot_dimension_numbers<[1], [0], [0], [1], [0, 0, 1, 1], [], []>} : vector<16x128xf32>, vector<128x32xf32>, vector<16x32xf32> -> vector<16x32xf32>
    %18 = arith.addf %15, %17 : vector<16x32xf32>
    %c0_12 = arith.constant 0 : index
    %c0_13 = arith.constant 0 : index
    %19 = vector.load %arg8[%c0_12, %c0_13] : memref<16x32xf32, #tpu.memory_space<vmem>>, vector<16x32xf32>
    tpu.vector_store %arg8[%c0_12, %c0_13], %18 {strides = array<i32>} : memref<16x32xf32, #tpu.memory_space<vmem>>, vector<16x32xf32>,
    %c0_i32_14 = arith.constant 0 : i32
    %20 = arith.cmpi eq, %arg1, %c0_i32_14 : i32
    %21 = arith.extui %20 : i1 to i32
    %c0_i32_15 = arith.constant 0 : i32
    %22 = arith.cmpi ne, %21, %c0_i32_15 : i32
    scf.if %22 {
      %c0_16 = arith.constant 0 : index
      %c0_17 = arith.constant 0 : index
      %23 = vector.load %arg8[%c0_16, %c0_17] : memref<16x32xf32, #tpu.memory_space<vmem>>, vector<16x32xf32>
      %c0_18 = arith.constant 0 : index
      %c0_19 = arith.constant 0 : index
      %24 = vector.load %arg6[%c0_18, %c0_19] : memref<1x32xf32, #tpu.memory_space<vmem>>, vector<1x32xf32>
      %25 = vector.broadcast %24 : vector<1x32xf32> to vector<16x32xf32>
      %26 = arith.addf %23, %25 : vector<16x32xf32>
      %c0_20 = arith.constant 0 : index
      %c0_21 = arith.constant 0 : index
      %27 = vector.load %arg7[%c0_20, %c0_21] : memref<16x32xf32, #tpu.memory_space<vmem>>, vector<16x32xf32>
      tpu.vector_store %arg7[%c0_20, %c0_21], %26 {strides = array<i32>} : memref<16x32xf32, #tpu.memory_space<vmem>>, vector<16x32xf32>,
    } else {
    }
    return
  }
  func.func @transform_0(%arg0: i32, %arg1: i32) -> (i32, i32) {
    %c0_i32 = arith.constant 0 : i32
    %c0_i32_0 = arith.constant 0 : i32
    return %arg0, %c0_i32 : i32, i32
  }
  func.func @transform_1(%arg0: i32, %arg1: i32) -> (i32, i32) {
    %c0_i32 = arith.constant 0 : i32
    %c0_i32_0 = arith.constant 0 : i32
    return %c0_i32, %arg1 : i32, i32
  }
  func.func @transform_2(%arg0: i32, %arg1: i32) -> (i32, i32) {
    %c0_i32 = arith.constant 0 : i32
    %c0_i32_0 = arith.constant 0 : i32
    return %c0_i32, %arg1 : i32, i32
  }
  func.func @transform_3(%arg0: i32, %arg1: i32) -> (i32, i32) {
    %c0_i32 = arith.constant 0 : i32
    %c0_i32_0 = arith.constant 0 : i32
    return %arg1, %c0_i32 : i32, i32
  }
  func.func @transform_4(%arg0: i32, %arg1: i32) -> (i32, i32) {
    %c0_i32 = arith.constant 0 : i32
    %c0_i32_0 = arith.constant 0 : i32
    %c0_i32_1 = arith.constant 0 : i32
    return %c0_i32, %c0_i32_0 : i32, i32
  }
  func.func @transform_5(%arg0: i32, %arg1: i32) -> (i32, i32) {
    %c0_i32 = arith.constant 0 : i32
    %c0_i32_0 = arith.constant 0 : i32
    return %arg0, %c0_i32 : i32, i32
  }
}

</mosaic_0001>

<llo_original>
// kernel: _ffn_call.1
$region0: #{_ffn_call.1}
  #allocation0 [shape = 'u32[]', space=smem, size = 0x4, offset = 0x4, fixed_abs, tag = 'smem constant byte address 0x4 - core index']
  #allocation1 [shape = 'u32[72,128]{1,0:T(1,128)}', space=vmem, size = 0x9000, scoped, tag = 'internal scratch']
  #allocation2 [shape = 'f32[16,32]{1,0:T(8,128)}', space=vmem, size = 0x2000, scoped, tag = 'scratch operand']
  %s0 = inlined_call_operand.vmem [shape: f32[16,32], index: 0, kind: input, shape index: {}]
  %s1 = inlined_call_operand.vmem [shape: f32[32,128], index: 1, kind: input, shape index: {}]
  %s2 = inlined_call_operand.vmem [shape: f32[1,128], index: 2, kind: input, shape index: {}]
  %s3 = inlined_call_operand.vmem [shape: f32[128,32], index: 3, kind: input, shape index: {}]
  %s4 = inlined_call_operand.vmem [shape: f32[1,32], index: 4, kind: input, shape index: {}]
  %s5 = inlined_call_operand.hbm [shape: f32[16,32], index: 5, kind: output, shape index: {}]
  %s6 = sld [smem:[#allocation0]]
  $region38: #{_ffn_call.1} parent=0
    _
  %s8 = ssub.s32 1, %s6
  %s9 = scalar_select 0, %s8, %s6
  $region1: #{_ffn_call.1} parent=0
    #allocation3 [shape = 'u8[8192]{0}', space=vmem, size = 0x2000, scoped, tag = 'output window, operand 0, single buffered']
    #allocation4 [shape = 's32[1]{0}', space=sflag, size = 0x4, scoped, tag = 'scoped memory for _ffn_call.1']
    %10 = vsyncpa [#allocation4], 0
    // Predicated region
    $region2: #{_ffn_call.1} parent=1 // pred_check
      _
    $region3: #{_ffn_call.1} parent=1 // pred_check_branch
      %12 = sbr.rel (0) target = $region5
    $region4: #{_ffn_call.1} parent=1 // pred_region
      _
    $region5: #{_ffn_call.1} parent=1 // pred_fallthru
      _
    // Predicated region
    $region6: #{_ffn_call.1} parent=1 // pred_check
      _
    $region7: #{_ffn_call.1} parent=1 // pred_check_branch
      %14 = sbr.rel (0) target = $region9
    $region8: #{_ffn_call.1} parent=1 // pred_region
      _
    $region9: #{_ffn_call.1} parent=1 // pred_fallthru
      _
    // Predicated region
    $region10: #{_ffn_call.1} parent=1 // pred_check
      _
    $region11: #{_ffn_call.1} parent=1 // pred_check_branch
      %16 = sbr.rel (0) target = $region13
    $region12: #{_ffn_call.1} parent=1 // pred_region
      _
    $region13: #{_ffn_call.1} parent=1 // pred_fallthru
      _
    // Predicated region
    $region14: #{_ffn_call.1} parent=1 // pred_check
      _
    $region15: #{_ffn_call.1} parent=1 // pred_check_branch
      %18 = sbr.rel (0) target = $region17
    $region16: #{_ffn_call.1} parent=1 // pred_region
      _
    $region17: #{_ffn_call.1} parent=1 // pred_fallthru
      _
    // Predicated region
    $region18: #{_ffn_call.1} parent=1 // pred_check
      _
    $region19: #{_ffn_call.1} parent=1 // pred_check_branch
      %20 = sbr.rel (0) target = $region21
    $region20: #{_ffn_call.1} parent=1 // pred_region
      _
    $region21: #{_ffn_call.1} parent=1 // pred_fallthru
      _
    %p21 = scmp.eq.s32.totalorder 0, 0
    // Predicated region
    $region22: #{_ffn_call.1} parent=1 // pred_check
      %p22 = pneg %p21
    $region23: #{_ffn_call.1} parent=1 // pred_check_branch
      %24 = sbr.rel (%p22) target = $region25
    $region24: #{_ffn_call.1} parent=1 // pred_region
      %vm25 = vcmask 261120
      %26 = vst.msk [vmem:[#allocation2] sm:$0xff] %vm25, 0.0
      %27 = vst.msk [vmem:[#allocation2 + $0x8] sm:$0xff] %vm25, 0.0
    $region25: #{_ffn_call.1} parent=1 // pred_fallthru
      _
    %v28 = vld [vmem:[%s0] sm:$0xff]
    %v29 = vld [vmem:[%s0 + $0x8] sm:$0xff]
    %v30 = vld [vmem:[%s1] sm:$0xff]
    %v31 = vld [vmem:[%s1 + $0x8] sm:$0xff]
    %v32 = vld [vmem:[%s1 + $0x10] sm:$0xff]
    %v33 = vld [vmem:[%s1 + $0x18] sm:$0xff]
    %v34 = vld [vmem:[%s2] sm:$0x1]
    %v36 = vperm.slane %v34, 0
    %vm38 = vcmask 261120
    %v40 = vsel %vm38, %v28, 0
    %v43 = vsel %vm38, %v29, 0
    %45 = vmatpush.msra.mxu0 0.0
    %46 = vmatpush.msra.mxu0 0.0
    %47 = vmatpush.msra.mxu0 0.0
    %48 = vmatpush.msra.mxu0 0.0
    %49 = vmatpush.msra.mxu0 0.0
    %50 = vmatpush.msra.mxu0 0.0
    %51 = vmatpush.msra.mxu0 0.0
    %52 = vmatpush.msra.mxu0 0.0
    %53 = vmatpush.msra.mxu0 0.0
    %54 = vmatpush.msra.mxu0 0.0
    %55 = vmatpush.msra.mxu0 0.0
    %56 = vmatpush.msra.mxu0 0.0
    %57 = vmatpush.msra.mxu0 %v33
    %58 = vmatpush.msra.mxu0 %v32
    %59 = vmatpush.msra.mxu0 %v31
    %60 = vmatpush.msra.mxu0 %v30
    %61 = vmatmul.f32.gmra.mxu0 %v40
    %v62 = vpop.f32.mrf.mxu0
    %v63 = vadd.f32 %v36, %v62
    %64 = vmatmul.f32.gmra.mxu0 %v43
    %v65 = vpop.f32.mrf.mxu0
    %v66 = vadd.f32 %v36, %v65
    %67 = vdwg.mxu0
    %v68 = vxor.u32 %v63, 2147483648
    %v69 = vxor.u32 %v66, 2147483648
    %v70 = vmul.f32 %v68, 1.442695
    %v71 = vpow.pop %v70
    %v72 = vmul.f32 %v69, 1.442695
    %v73 = vpow.pop %v72
    %v74 = vadd.f32 %v71, 1.0
    %v75 = vadd.f32 %v73, 1.0
    %v76 = vrcp.pop %v74
    %v77 = vmul.f32 %v74, %v76
    %v78 = vsub.f32 1.0, %v77
    %v79 = vmul.f32 %v76, %v78
    %v80 = vadd.f32 %v76, %v79
    %vm81 = vweird.f32 %v74
    %vm82 = vweird.f32 %v76
    %vm83 = vmor %vm81, %vm82
    %v84 = vsel %vm83, %v76, %v80
    %v85 = vand.u32 2147483647, %v74
    %vm86 = vcmp.eq.f32.partialorder %v85, 8.507059e+37
    %v87 = vand.u32 %v74, 2147483648
    %v88 = vor.u32 1.1754944e-38, %v87
    %v89 = vsel %vm86, %v88, %v84
    %v90 = vmul.f32 1.0, %v89
    %v91 = vrcp.pop %v75
    %v92 = vmul.f32 %v75, %v91
    %v93 = vsub.f32 1.0, %v92
    %v94 = vmul.f32 %v91, %v93
    %v95 = vadd.f32 %v91, %v94
    %vm96 = vweird.f32 %v75
    %vm97 = vweird.f32 %v91
    %vm98 = vmor %vm96, %vm97
    %v99 = vsel %vm98, %v91, %v95
    %v100 = vand.u32 2147483647, %v75
    %vm101 = vcmp.eq.f32.partialorder %v100, 8.507059e+37
    %v102 = vand.u32 %v75, 2147483648
    %v103 = vor.u32 1.1754944e-38, %v102
    %v104 = vsel %vm101, %v103, %v99
    %v105 = vmul.f32 1.0, %v104
    %v106 = vmul.f32 %v63, %v90
    %v107 = vmul.f32 %v66, %v105
    %v108 = vld [vmem:[#allocation2] sm:$0xff]
    %v109 = vld [vmem:[#allocation2 + $0x8] sm:$0xff]
    %v110 = vld [vmem:[%s3] sm:$0xff]
    %v111 = vld [vmem:[%s3 + $0x8] sm:$0xff]
    %v112 = vld [vmem:[%s3 + $0x10] sm:$0xff]
    %v113 = vld [vmem:[%s3 + $0x18] sm:$0xff]
    %v114 = vld [vmem:[%s3 + $0x20] sm:$0xff]
    %v115 = vld [vmem:[%s3 + $0x28] sm:$0xff]
    %v116 = vld [vmem:[%s3 + $0x30] sm:$0xff]
    %v117 = vld [vmem:[%s3 + $0x38] sm:$0xff]
    %v118 = vld [vmem:[%s3 + $0x40] sm:$0xff]
    %v119 = vld [vmem:[%s3 + $0x48] sm:$0xff]
    %v120 = vld [vmem:[%s3 + $0x50] sm:$0xff]
    %v121 = vld [vmem:[%s3 + $0x58] sm:$0xff]
    %v122 = vld [vmem:[%s3 + $0x60] sm:$0xff]
    %v123 = vld [vmem:[%s3 + $0x68] sm:$0xff]
    %v124 = vld [vmem:[%s3 + $0x70] sm:$0xff]
    %v125 = vld [vmem:[%s3 + $0x78] sm:$0xff]
    %126 = vmatpush.msra.mxu0 %v125
    %127 = vmatpush.msra.mxu0 %v124
    %128 = vmatpush.msra.mxu0 %v123
    %129 = vmatpush.msra.mxu0 %v122
    %130 = vmatpush.msra.mxu0 %v121
    %131 = vmatpush.msra.mxu0 %v120
    %132 = vmatpush.msra.mxu0 %v119
    %133 = vmatpush.msra.mxu0 %v118
    %134 = vmatpush.msra.mxu0 %v117
    %135 = vmatpush.msra.mxu0 %v116
    %136 = vmatpush.msra.mxu0 %v115
    %137 = vmatpush.msra.mxu0 %v114
    %138 = vmatpush.msra.mxu0 %v113
    %139 = vmatpush.msra.mxu0 %v112
    %140 = vmatpush.msra.mxu0 %v111
    %141 = vmatpush.msra.mxu0 %v110
    %142 = vmatmul.f32.gmra.mxu0 %v106
    %v143 = vpop.f32.mrf.mxu0
    %v144 = vadd.f32 0.0, %v143
    %145 = vmatmul.f32.gmra.mxu0 %v107
    %v146 = vpop.f32.mrf.mxu0
    %v147 = vadd.f32 0.0, %v146
    %148 = vdwg.mxu0
    %v149 = vadd.f32 %v108, %v144
    %v150 = vadd.f32 %v109, %v147
    %151 = vst.msk [vmem:[#allocation2] sm:$0xff] %vm38, %v149
    %152 = vst.msk [vmem:[#allocation2 + $0x8] sm:$0xff] %vm38, %v150
    // Predicated region
    $region26: #{_ffn_call.1} parent=1 // pred_check
      %p153 = pneg %p21
    $region27: #{_ffn_call.1} parent=1 // pred_check_branch
      %155 = sbr.rel (%p153) target = $region29
    $region28: #{_ffn_call.1} parent=1 // pred_region
      %v156 = vld [vmem:[#allocation2] sm:$0xff]
      %v157 = vld [vmem:[#allocation2 + $0x8] sm:$0xff]
      %v158 = vld [vmem:[%s4] sm:$0x1]
      %v160 = vperm.slane %v158, 0
      %v162 = vadd.f32 %v156, %v160
      %v163 = vadd.f32 %v157, %v160
      %164 = vst.msk [vmem:[#allocation3] sm:$0xff] %vm38, %v162
      %165 = vst.msk [vmem:[#allocation3 + $0x8] sm:$0xff] %vm38, %v163
    $region29: #{_ffn_call.1} parent=1 // pred_fallthru
      _
    // Predicated region
    $region30: #{_ffn_call.1} parent=1 // pred_check
      _
    $region31: #{_ffn_call.1} parent=1 // pred_check_branch
      %167 = sbr.rel (0) target = $region33
    $region32: #{_ffn_call.1} parent=1 // pred_region
      %169 = vsyncadd [#allocation4], 0
      %s170 = sshll.u32 [#allocation3], 4
      %s171 = int_to_ptr.vmem [resolvable:$true] %s170
      %s172 = sshll.u32 %s5, 4
      %s173 = int_to_ptr.hbm [resolvable:$true] %s172
      %178 = dma.vmem_to_hbm [thread:$0]  %s171, 256, %s173, [#allocation4], 128, 128, 8
    $region33: #{_ffn_call.1} parent=1 // pred_fallthru
      _
    // Predicated region
    $region34: #{_ffn_call.1} parent=1 // pred_check
      _
    $region35: #{_ffn_call.1} parent=1 // pred_check_branch
      %180 = sbr.rel (0) target = $region37
    $region36: #{_ffn_call.1} parent=1 // pred_region
      %182 = dma.done [#allocation4], 256
    $region37: #{_ffn_call.1} parent=1 // pred_fallthru
      _
    %183 = vsyncpa [#allocation4], 1

// kernel: _ffn_call.1
$region0: #{_ffn_call.1}
  #allocation0 [shape = 'u32[]', space=smem, size = 0x4, offset = 0x4, fixed_abs, tag = 'smem constant byte address 0x4 - core index']
  #allocation1 [shape = 'u32[72,128]{1,0:T(1,128)}', space=vmem, size = 0x9000, scoped, tag = 'internal scratch']
  #allocation2 [shape = 'f32[16,32]{1,0:T(8,128)}', space=vmem, size = 0x2000, scoped, tag = 'scratch operand']
  %s0 = inlined_call_operand.vmem [shape: f32[16,32], index: 0, kind: input, shape index: {}]
  %s1 = inlined_call_operand.vmem [shape: f32[32,128], index: 1, kind: input, shape index: {}]
  %s2 = inlined_call_operand.vmem [shape: f32[1,128], index: 2, kind: input, shape index: {}]
  %s3 = inlined_call_operand.vmem [shape: f32[128,32], index: 3, kind: input, shape index: {}]
  %s4 = inlined_call_operand.vmem [shape: f32[1,32], index: 4, kind: input, shape index: {}]
  %s5 = inlined_call_operand.hbm [shape: f32[16,32], index: 5, kind: output, shape index: {}]
  %s6 = sld [smem:[#allocation0]]
  $region38: #{_ffn_call.1} parent=0
    _
  %s8 = ssub.s32 1, %s6
  %s9 = scalar_select 0, %s8, %s6
  $region1: #{_ffn_call.1} parent=0
    #allocation3 [shape = 'u8[8192]{0}', space=vmem, size = 0x2000, scoped, tag = 'output window, operand 0, single buffered']
    #allocation4 [shape = 's32[1]{0}', space=sflag, size = 0x4, scoped, tag = 'scoped memory for _ffn_call.1']
    %10 = vsyncpa [#allocation4], 0
    // Predicated region
    $region2: #{_ffn_call.1} parent=1 // pred_check
      _
    $region3: #{_ffn_call.1} parent=1 // pred_check_branch
      %12 = sbr.rel (0) target = $region5
    $region4: #{_ffn_call.1} parent=1 // pred_region
      _
    $region5: #{_ffn_call.1} parent=1 // pred_fallthru
      _
    // Predicated region
    $region6: #{_ffn_call.1} parent=1 // pred_check
      _
    $region7: #{_ffn_call.1} parent=1 // pred_check_branch
      %14 = sbr.rel (0) target = $region9
    $region8: #{_ffn_call.1} parent=1 // pred_region
      _
    $region9: #{_ffn_call.1} parent=1 // pred_fallthru
      _
    // Predicated region
    $region10: #{_ffn_call.1} parent=1 // pred_check
      _
    $region11: #{_ffn_call.1} parent=1 // pred_check_branch
      %16 = sbr.rel (0) target = $region13
    $region12: #{_ffn_call.1} parent=1 // pred_region
      _
    $region13: #{_ffn_call.1} parent=1 // pred_fallthru
      _
    // Predicated region
    $region14: #{_ffn_call.1} parent=1 // pred_check
      _
    $region15: #{_ffn_call.1} parent=1 // pred_check_branch
      %18 = sbr.rel (0) target = $region17
    $region16: #{_ffn_call.1} parent=1 // pred_region
      _
    $region17: #{_ffn_call.1} parent=1 // pred_fallthru
      _
    // Predicated region
    $region18: #{_ffn_call.1} parent=1 // pred_check
      _
    $region19: #{_ffn_call.1} parent=1 // pred_check_branch
      %20 = sbr.rel (0) target = $region21
    $region20: #{_ffn_call.1} parent=1 // pred_region
      _
    $region21: #{_ffn_call.1} parent=1 // pred_fallthru
      _
    %p21 = scmp.eq.s32.totalorder 0, 0
    // Predicated region
    $region22: #{_ffn_call.1} parent=1 // pred_check
      %p22 = pneg %p21
    $region23: #{_ffn_call.1} parent=1 // pred_check_branch
      %24 = sbr.rel (%p22) target = $region25
    $region24: #{_ffn_call.1} parent=1 // pred_region
      %vm25 = vcmask 261120
      %26 = vst.msk [vmem:[#allocation2] sm:$0xff] %vm25, 0.0
      %27 = vst.msk [vmem:[#allocation2 + $0x8] sm:$0xff] %vm25, 0.0
    $region25: #{_ffn_call.1} parent=1 // pred_fallthru
      _
    %v28 = vld [vmem:[%s0] sm:$0xff]
    %v29 = vld [vmem:[%s0 + $0x8] sm:$0xff]
    %v30 = vld [vmem:[%s1] sm:$0xff]
    %v31 = vld [vmem:[%s1 + $0x8] sm:$0xff]
    %v32 = vld [vmem:[%s1 + $0x10] sm:$0xff]
    %v33 = vld [vmem:[%s1 + $0x18] sm:$0xff]
    %v34 = vld [vmem:[%s2] sm:$0x1]
    %v36 = vperm.slane %v34, 0
    %vm38 = vcmask 261120
    %v40 = vsel %vm38, %v28, 0
    %v43 = vsel %vm38, %v29, 0
    %45 = vmatpush.msra.mxu0 0.0
    %46 = vmatpush.msra.mxu0 0.0
    %47 = vmatpush.msra.mxu0 0.0
    %48 = vmatpush.msra.mxu0 0.0
    %49 = vmatpush.msra.mxu0 0.0
    %50 = vmatpush.msra.mxu0 0.0
    %51 = vmatpush.msra.mxu0 0.0
    %52 = vmatpush.msra.mxu0 0.0
    %53 = vmatpush.msra.mxu0 0.0
    %54 = vmatpush.msra.mxu0 0.0
    %55 = vmatpush.msra.mxu0 0.0
    %56 = vmatpush.msra.mxu0 0.0
    %57 = vmatpush.msra.mxu0 %v33
    %58 = vmatpush.msra.mxu0 %v32
    %59 = vmatpush.msra.mxu0 %v31
    %60 = vmatpush.msra.mxu0 %v30
    %61 = vmatmul.f32.gmra.mxu0 %v40
    %v62 = vpop.f32.mrf.mxu0
    %v63 = vadd.f32 %v36, %v62
    %64 = vmatmul.f32.gmra.mxu0 %v43
    %v65 = vpop.f32.mrf.mxu0
    %v66 = vadd.f32 %v36, %v65
    %67 = vdwg.mxu0
    %v68 = vxor.u32 %v63, 2147483648
    %v69 = vxor.u32 %v66, 2147483648
    %v70 = vmul.f32 %v68, 1.442695
    %v71 = vpow.pop %v70
    %v72 = vmul.f32 %v69, 1.442695
    %v73 = vpow.pop %v72
    %v74 = vadd.f32 %v71, 1.0
    %v75 = vadd.f32 %v73, 1.0
    %v76 = vrcp.pop %v74
    %v77 = vmul.f32 %v74, %v76
    %v78 = vsub.f32 1.0, %v77
    %v79 = vmul.f32 %v76, %v78
    %v80 = vadd.f32 %v76, %v79
    %vm81 = vweird.f32 %v74
    %vm82 = vweird.f32 %v76
    %vm83 = vmor %vm81, %vm82
    %v84 = vsel %vm83, %v76, %v80
    %v85 = vand.u32 2147483647, %v74
    %vm86 = vcmp.eq.f32.partialorder %v85, 8.507059e+37
    %v87 = vand.u32 %v74, 2147483648
    %v88 = vor.u32 1.1754944e-38, %v87
    %v89 = vsel %vm86, %v88, %v84
    %v90 = vmul.f32 1.0, %v89
    %v91 = vrcp.pop %v75
    %v92 = vmul.f32 %v75, %v91
    %v93 = vsub.f32 1.0, %v92
    %v94 = vmul.f32 %v91, %v93
    %v95 = vadd.f32 %v91, %v94
    %vm96 = vweird.f32 %v75
    %vm97 = vweird.f32 %v91
    %vm98 = vmor %vm96, %vm97
    %v99 = vsel %vm98, %v91, %v95
    %v100 = vand.u32 2147483647, %v75
    %vm101 = vcmp.eq.f32.partialorder %v100, 8.507059e+37
    %v102 = vand.u32 %v75, 2147483648
    %v103 = vor.u32 1.1754944e-38, %v102
    %v104 = vsel %vm101, %v103, %v99
    %v105 = vmul.f32 1.0, %v104
    %v106 = vmul.f32 %v63, %v90
    %v107 = vmul.f32 %v66, %v105
    %v108 = vld [vmem:[#allocation2] sm:$0xff]
    %v109 = vld [vmem:[#allocation2 + $0x8] sm:$0xff]
    %v110 = vld [vmem:[%s3] sm:$0xff]
    %v111 = vld [vmem:[%s3 + $0x8] sm:$0xff]
    %v112 = vld [vmem:[%s3 + $0x10] sm:$0xff]
    %v113 = vld [vmem:[%s3 + $0x18] sm:$0xff]
    %v114 = vld [vmem:[%s3 + $0x20] sm:$0xff]
    %v115 = vld [vmem:[%s3 + $0x28] sm:$0xff]
    %v116 = vld [vmem:[%s3 + $0x30] sm:$0xff]
    %v117 = vld [vmem:[%s3 + $0x38] sm:$0xff]
    %v118 = vld [vmem:[%s3 + $0x40] sm:$0xff]
    %v119 = vld [vmem:[%s3 + $0x48] sm:$0xff]
    %v120 = vld [vmem:[%s3 + $0x50] sm:$0xff]
    %v121 = vld [vmem:[%s3 + $0x58] sm:$0xff]
    %v122 = vld [vmem:[%s3 + $0x60] sm:$0xff]
    %v123 = vld [vmem:[%s3 + $0x68] sm:$0xff]
    %v124 = vld [vmem:[%s3 + $0x70] sm:$0xff]
    %v125 = vld [vmem:[%s3 + $0x78] sm:$0xff]
    %126 = vmatpush.msra.mxu0 %v125
    %127 = vmatpush.msra.mxu0 %v124
    %128 = vmatpush.msra.mxu0 %v123
    %129 = vmatpush.msra.mxu0 %v122
    %130 = vmatpush.msra.mxu0 %v121
    %131 = vmatpush.msra.mxu0 %v120
    %132 = vmatpush.msra.mxu0 %v119
    %133 = vmatpush.msra.mxu0 %v118
    %134 = vmatpush.msra.mxu0 %v117
    %135 = vmatpush.msra.mxu0 %v116
    %136 = vmatpush.msra.mxu0 %v115
    %137 = vmatpush.msra.mxu0 %v114
    %138 = vmatpush.msra.mxu0 %v113
    %139 = vmatpush.msra.mxu0 %v112
    %140 = vmatpush.msra.mxu0 %v111
    %141 = vmatpush.msra.mxu0 %v110
    %142 = vmatmul.f32.gmra.mxu0 %v106
    %v143 = vpop.f32.mrf.mxu0
    %v144 = vadd.f32 0.0, %v143
    %145 = vmatmul.f32.gmra.mxu0 %v107
    %v146 = vpop.f32.mrf.mxu0
    %v147 = vadd.f32 0.0, %v146
    %148 = vdwg.mxu0
    %v149 = vadd.f32 %v108, %v144
    %v150 = vadd.f32 %v109, %v147
    %151 = vst.msk [vmem:[#allocation2] sm:$0xff] %vm38, %v149
    %152 = vst.msk [vmem:[#allocation2 + $0x8] sm:$0xff] %vm38, %v150
    // Predicated region
    $region26: #{_ffn_call.1} parent=1 // pred_check
      %p153 = pneg %p21
    $region27: #{_ffn_call.1} parent=1 // pred_check_branch
      %155 = sbr.rel (%p153) target = $region29
    $region28: #{_ffn_call.1} parent=1 // pred_region
      %v156 = vld [vmem:[#allocation2] sm:$0xff]
      %v157 = vld [vmem:[#allocation2 + $0x8] sm:$0xff]
      %v158 = vld [vmem:[%s4] sm:$0x1]
      %v160 = vperm.slane %v158, 0
      %v162 = vadd.f32 %v156, %v160
      %v163 = vadd.f32 %v157, %v160
      %164 = vst.msk [vmem:[#allocation3] sm:$0xff] %vm38, %v162
      %165 = vst.msk [vmem:[#allocation3 + $0x8] sm:$0xff] %vm38, %v163
    $region29: #{_ffn_call.1} parent=1 // pred_fallthru
      _
    // Predicated region
    $region30: #{_ffn_call.1} parent=1 // pred_check
      _
    $region31: #{_ffn_call.1} parent=1 // pred_check_branch
      %167 = sbr.rel (0) target = $region33
    $region32: #{_ffn_call.1} parent=1 // pred_region
      %169 = vsyncadd [#allocation4], 0
      %s170 = sshll.u32 [#allocation3], 4
      %s171 = int_to_ptr.vmem [resolvable:$true] %s170
      %s172 = sshll.u32 %s5, 4
      %s173 = int_to_ptr.hbm [resolvable:$true] %s172
      %178 = dma.vmem_to_hbm [thread:$0]  %s171, 256, %s173, [#allocation4], 128, 128, 8
    $region33: #{_ffn_call.1} parent=1 // pred_fallthru
      _
    // Predicated region
    $region34: #{_ffn_call.1} parent=1 // pred_check
      _
    $region35: #{_ffn_call.1} parent=1 // pred_check_branch
      %180 = sbr.rel (0) target = $region37
    $region36: #{_ffn_call.1} parent=1 // pred_region
      %182 = dma.done [#allocation4], 256
    $region37: #{_ffn_call.1} parent=1 // pred_fallthru
      _
    %183 = vsyncpa [#allocation4], 1

</llo_original>
